<compile_context>
chip_gen: v7x
topology: tpu7x:2x2x1
jax: 0.10.0
libtpu: 0.0.40
codegen_flags: <defaults>
</compile_context>

<pallas_src>
import functools
import math

import jax
import jax.numpy as jnp
from jax.experimental import pallas as pl
from jax.experimental.pallas import tpu as pltpu


def _round_up(a, b):
    return -(-a // b) * b


def _cdiv(a, b):
    return -(-a // b)


def _denoise_loss_kernel(out_ref, tgt_ref, part_ref, *,
                         rows, tile_rows, cols, blocks_per_shard, exact):
    """Accumulate fused (MSE + BCEWithLogits) partial sums.

    out_ref, tgt_ref : (tile_rows, cols) VMEM input tiles.
    part_ref         : (8, cols) f32 VMEM output tile (one per shard),
                       resident accumulator across the inner grid axis.
    """
    j = pl.program_id(1)

    @pl.when(j == 0)
    def _():
        part_ref[...] = jnp.zeros_like(part_ref)

    x = out_ref[...].astype(jnp.float32)   # logits / predictions
    y = tgt_ref[...].astype(jnp.float32)   # targets

    # Fused per-element loss term:
    #   MSE:            (x - y)^2
    #   BCEWithLogits:  max(x, 0) - x*y + log1p(exp(-|x|))   (stable form)
    diff = x - y
    term = (diff * diff
            + jnp.maximum(x, 0.0) - x * y
            + jnp.log1p(jnp.exp(-jnp.abs(x))))

    def _accumulate(t):
        # (tile_rows, cols) -> (tile_rows//8, 8, cols) is a layout-preserving
        # split of the sublane-group axis; summing axis 0 is pure vreg adds.
        part_ref[...] += jnp.sum(t.reshape(tile_rows // 8, 8, cols), axis=0)

    if exact:
        _accumulate(term)
    else:
        # Tail handling lives off the hot path: only the block that over-runs
        # the row count (or a phantom block of an imbalanced shard) pays for
        # the iota/compare/select; full blocks take the un-masked branch.
        block = pl.program_id(0) * blocks_per_shard + j     # global block idx
        num_valid = rows - block * tile_rows                # <= 0 for phantom

        @pl.when(num_valid >= tile_rows)
        def _():
            _accumulate(term)

        @pl.when(num_valid < tile_rows)
        def _():
            row_ids = jax.lax.broadcasted_iota(jnp.int32, (tile_rows, cols), 0)
            _accumulate(jnp.where(row_ids < num_valid, term, 0.0))


def _reference(output, target):
    # Plain-JAX reference (matches PyTorch MSELoss(sum) + BCEWithLogits(sum)).
    x = output.astype(jnp.float32)
    y = target.astype(jnp.float32)
    mse = jnp.sum((x - y) ** 2)
    bce = jnp.sum(jnp.maximum(x, 0.0) - x * y + jnp.log1p(jnp.exp(-jnp.abs(x))))
    return (mse + bce) / target.shape[0] / target.shape[2]


def denoise_loss(output, target, *, num_shards=2,
                 block_bytes=2 * 1024 * 1024,
                 min_pallas_elements=1 << 20):
    """Pallas equivalent of DenoiseLoss.forward(output, target).

    output, target : (batch, channels, seq) arrays (f32 or bf16).
    Returns a scalar f32 loss:
        (sum((o-t)^2) + sum(BCEWithLogits(o, t))) / batch / seq
    """
    assert output.shape == target.shape
    batch = target.shape[0]
    seq = target.shape[2]
    inv_norm = 1.0 / (batch * seq)
    total = math.prod(output.shape)

    cols = output.shape[-1]
    rows = total // cols

    itemsizes = (jnp.dtype(output.dtype).itemsize,
                 jnp.dtype(target.dtype).itemsize)
    sub = max(8, 32 // min(itemsizes))        # sublane multiple per dtype
    bytes_per_row = cols * max(itemsizes)

    if total < min_pallas_elements or sub * bytes_per_row > 4 * block_bytes:
        # Tiny inputs: pallas_call fixed cost dominates, fused XLA is faster.
        # Huge single rows: column tiling not implemented (see TODO above).
        return _reference(output, target)

    # Free reshape (collapses leading dims only): (N, C, S) -> (N*C, S).
    out2d = output.reshape(rows, cols)
    tgt2d = target.reshape(rows, cols)

    # Row-block size: as big as the per-input VMEM budget allows (multiple of
    # the dtype sublane tile), but no bigger than one shard's share of rows.
    cap = max(sub, (block_bytes // bytes_per_row) // sub * sub)
    tile_rows = max(sub, min(cap, _round_up(_cdiv(rows, num_shards), sub)))
    n_blocks = _cdiv(rows, tile_rows)
    blocks_per_shard = _cdiv(n_blocks, num_shards)
    exact = (num_shards * blocks_per_shard * tile_rows == rows)

    if exact:
        def in_map(c, j):
            return (c * blocks_per_shard + j, 0)
    else:
        last = n_blocks - 1

        def in_map(c, j):
            # Clamp phantom blocks of an imbalanced shard back in bounds; the
            # kernel masks their contribution to exactly zero.
            return (jnp.minimum(c * blocks_per_shard + j, last), 0)

    kernel = functools.partial(
        _denoise_loss_kernel,
        rows=rows, tile_rows=tile_rows, cols=cols,
        blocks_per_shard=blocks_per_shard, exact=exact)

    cost = pl.CostEstimate(
        flops=8 * total,
        transcendentals=2 * total,
        bytes_accessed=total * sum(itemsizes) + num_shards * 8 * cols * 4)

    partials = pl.pallas_call(
        kernel,
        out_shape=jax.ShapeDtypeStruct((num_shards * 8, cols), jnp.float32),
        grid_spec=pltpu.PrefetchScalarGridSpec(
            num_scalar_prefetch=0,
            grid=(num_shards, blocks_per_shard),
            in_specs=[
                pl.BlockSpec((tile_rows, cols), in_map),
                pl.BlockSpec((tile_rows, cols), in_map),
            ],
            out_specs=pl.BlockSpec((8, cols), lambda c, j: (c, 0)),
        ),
        compiler_params=pltpu.CompilerParams(
            dimension_semantics=("parallel", "arbitrary")),
        cost_estimate=cost,
    )(out2d, tgt2d)

    # Tiny cross-shard / cross-lane reduction + normalization in the wrapper.
    return jnp.sum(partials) * inv_norm


if __name__ == "__main__":
    key = jax.random.PRNGKey(0)
    k1, k2, k3, k4, k5, k6 = jax.random.split(key, 6)

    # (batch, channels, sequence) — small shapes consistent with the module.
    B, C, S = 2, 4, 16
    output = jax.random.normal(k1, (B, C, S), dtype=jnp.float32)
    target = jax.random.uniform(k2, (B, C, S), dtype=jnp.float32)  # in [0, 1]
    loss = denoise_loss(output, target, min_pallas_elements=0)  # force Pallas
    jax.block_until_ready(loss)
    ref = _reference(output, target)
    assert jnp.allclose(loss, ref, rtol=1e-5, atol=1e-5), (loss, ref)

    # Multi-block grid: second shard gets a partial (masked) tail block.
    B2, C2, S2 = 3, 5, 263
    output2 = jax.random.normal(k3, (B2, C2, S2), dtype=jnp.float32)
    target2 = jax.random.uniform(k4, (B2, C2, S2), dtype=jnp.float32)
    loss2 = denoise_loss(output2, target2, min_pallas_elements=0)
    jax.block_until_ready(loss2)
    ref2 = _reference(output2, target2)
    assert jnp.allclose(loss2, ref2, rtol=1e-5, atol=1e-4), (loss2, ref2)

    # bf16 inputs: 16-row sublane tiles, masked tail block.
    B3, C3, S3 = 2, 9, 384
    output3 = jax.random.normal(k5, (B3, C3, S3), jnp.float32).astype(jnp.bfloat16)
    target3 = jax.random.uniform(k6, (B3, C3, S3), jnp.float32).astype(jnp.bfloat16)
    loss3 = denoise_loss(output3, target3, min_pallas_elements=0)
    jax.block_until_ready(loss3)
    ref3 = _reference(output3, target3)
    assert jnp.allclose(loss3, ref3, rtol=1e-4, atol=1e-4), (loss3, ref3)

    print("KERNEL_OK")
</pallas_src>

<mosaic_0001>
module attributes {stable_mosaic.version = 11 : i64} {
  func.func @_denoise_loss_kernel(%arg0: i32, %arg1: i32, %arg2: memref<8x16xf32, #tpu.memory_space<vmem>>, %arg3: memref<8x16xf32, #tpu.memory_space<vmem>>, %arg4: memref<8x16xf32, #tpu.memory_space<vmem>>) attributes {dimension_semantics = [#tpu.dimension_semantics<parallel>, #tpu.dimension_semantics<arbitrary>], iteration_bounds = array<i64: 2, 1>, scalar_prefetch = 0 : i64, scratch_operands = 0 : i64, tpu.core_type = #tpu.core_type<tc>, window_params = [{transform_indices = @transform_0, window_bounds = array<i64: 8, 16>}, {transform_indices = @transform_1, window_bounds = array<i64: 8, 16>}, {transform_indices = @transform_2, window_bounds = array<i64: 8, 16>}]} {
    %c0_i32 = arith.constant 0 : i32
    %0 = arith.cmpi eq, %arg1, %c0_i32 : i32
    %1 = arith.extui %0 : i1 to i32
    %c0_i32_0 = arith.constant 0 : i32
    %2 = arith.cmpi ne, %1, %c0_i32_0 : i32
    scf.if %2 {
      %cst_10 = arith.constant 0.000000e+00 : f32
      %28 = vector.broadcast %cst_10 : f32 to vector<8x16xf32>
      %c0_11 = arith.constant 0 : index
      %c0_12 = arith.constant 0 : index
      %29 = vector.load %arg4[%c0_11, %c0_12] : memref<8x16xf32, #tpu.memory_space<vmem>>, vector<8x16xf32>
      tpu.vector_store %arg4[%c0_11, %c0_12], %28 {strides = array<i32>} : memref<8x16xf32, #tpu.memory_space<vmem>>, vector<8x16xf32>,
    } else {
    }
    %c0 = arith.constant 0 : index
    %c0_1 = arith.constant 0 : index
    %3 = vector.load %arg2[%c0, %c0_1] : memref<8x16xf32, #tpu.memory_space<vmem>>, vector<8x16xf32>
    %c0_2 = arith.constant 0 : index
    %c0_3 = arith.constant 0 : index
    %4 = vector.load %arg3[%c0_2, %c0_3] : memref<8x16xf32, #tpu.memory_space<vmem>>, vector<8x16xf32>
    %5 = arith.subf %3, %4 : vector<8x16xf32>
    %6 = arith.mulf %5, %5 : vector<8x16xf32>
    %cst = arith.constant 0.000000e+00 : f32
    %7 = vector.broadcast %cst : f32 to vector<8x16xf32>
    %8 = arith.maximumf %3, %7 : vector<8x16xf32>
    %9 = arith.addf %6, %8 : vector<8x16xf32>
    %10 = arith.mulf %3, %4 : vector<8x16xf32>
    %11 = arith.subf %9, %10 : vector<8x16xf32>
    %12 = math.absf %3 : vector<8x16xf32>
    %cst_4 = arith.constant 0.000000e+00 : f32
    %13 = vector.broadcast %cst_4 : f32 to vector<8x16xf32>
    %14 = arith.subf %13, %12 : vector<8x16xf32>
    %15 = math.exp %14 : vector<8x16xf32>
    %16 = math.log1p %15 : vector<8x16xf32>
    %17 = arith.addf %11, %16 : vector<8x16xf32>
    %c1_i32 = arith.constant 1 : i32
    %18 = arith.muli %arg0, %c1_i32 : i32
    %19 = arith.addi %18, %arg1 : i32
    %c8_i32 = arith.constant 8 : i32
    %20 = arith.muli %19, %c8_i32 : i32
    %c8_i32_5 = arith.constant 8 : i32
    %21 = arith.subi %c8_i32_5, %20 : i32
    %c8_i32_6 = arith.constant 8 : i32
    %22 = arith.cmpi sge, %21, %c8_i32_6 : i32
    %23 = arith.extui %22 : i1 to i32
    %c0_i32_7 = arith.constant 0 : i32
    %24 = arith.cmpi ne, %23, %c0_i32_7 : i32
    scf.if %24 {
      %c0_10 = arith.constant 0 : index
      %c0_11 = arith.constant 0 : index
      %28 = vector.load %arg4[%c0_10, %c0_11] : memref<8x16xf32, #tpu.memory_space<vmem>>, vector<8x16xf32>
      %29 = vector.shape_cast %17 : vector<8x16xf32> to vector<1x8x16xf32>
      %cst_12 = arith.constant dense<0.000000e+00> : vector<8x16xf32>
      %30 = vector.multi_reduction <add>, %29, %cst_12 [0] : vector<1x8x16xf32> to vector<8x16xf32>
      %31 = arith.addf %28, %30 : vector<8x16xf32>
      %c0_13 = arith.constant 0 : index
      %c0_14 = arith.constant 0 : index
      %32 = vector.load %arg4[%c0_13, %c0_14] : memref<8x16xf32, #tpu.memory_space<vmem>>, vector<8x16xf32>
      tpu.vector_store %arg4[%c0_13, %c0_14], %31 {strides = array<i32>} : memref<8x16xf32, #tpu.memory_space<vmem>>, vector<8x16xf32>,
    } else {
    }
    %c8_i32_8 = arith.constant 8 : i32
    %25 = arith.cmpi slt, %21, %c8_i32_8 : i32
    %26 = arith.extui %25 : i1 to i32
    %c0_i32_9 = arith.constant 0 : i32
    %27 = arith.cmpi ne, %26, %c0_i32_9 : i32
    scf.if %27 {
      %28 = tpu.iota {dimensions = array<i32: 0>} : vector<8x16xi32>
      %29 = vector.broadcast %21 : i32 to vector<8x16xi32>
      %30 = arith.cmpi slt, %28, %29 : vector<8x16xi32>
      %cst_10 = arith.constant 0.000000e+00 : f32
      %31 = vector.broadcast %cst_10 : f32 to vector<8x16xf32>
      %32 = arith.select %30, %17, %31 : vector<8x16xi1>, vector<8x16xf32>
      %c0_11 = arith.constant 0 : index
      %c0_12 = arith.constant 0 : index
      %33 = vector.load %arg4[%c0_11, %c0_12] : memref<8x16xf32, #tpu.memory_space<vmem>>, vector<8x16xf32>
      %34 = vector.shape_cast %32 : vector<8x16xf32> to vector<1x8x16xf32>
      %cst_13 = arith.constant dense<0.000000e+00> : vector<8x16xf32>
      %35 = vector.multi_reduction <add>, %34, %cst_13 [0] : vector<1x8x16xf32> to vector<8x16xf32>
      %36 = arith.addf %33, %35 : vector<8x16xf32>
      %c0_14 = arith.constant 0 : index
      %c0_15 = arith.constant 0 : index
      %37 = vector.load %arg4[%c0_14, %c0_15] : memref<8x16xf32, #tpu.memory_space<vmem>>, vector<8x16xf32>
      tpu.vector_store %arg4[%c0_14, %c0_15], %36 {strides = array<i32>} : memref<8x16xf32, #tpu.memory_space<vmem>>, vector<8x16xf32>,
    } else {
    }
    return
  }
  func.func @transform_0(%arg0: i32, %arg1: i32) -> (i32, i32) {
    %c1_i32 = arith.constant 1 : i32
    %0 = arith.muli %arg0, %c1_i32 : i32
    %1 = arith.addi %0, %arg1 : i32
    %c0_i32 = arith.constant 0 : i32
    %2 = arith.minsi %1, %c0_i32 : i32
    %c0_i32_0 = arith.constant 0 : i32
    %c0_i32_1 = arith.constant 0 : i32
    return %2, %c0_i32_0 : i32, i32
  }
  func.func @transform_1(%arg0: i32, %arg1: i32) -> (i32, i32) {
    %c1_i32 = arith.constant 1 : i32
    %0 = arith.muli %arg0, %c1_i32 : i32
    %1 = arith.addi %0, %arg1 : i32
    %c0_i32 = arith.constant 0 : i32
    %2 = arith.minsi %1, %c0_i32 : i32
    %c0_i32_0 = arith.constant 0 : i32
    %c0_i32_1 = arith.constant 0 : i32
    return %2, %c0_i32_0 : i32, i32
  }
  func.func @transform_2(%arg0: i32, %arg1: i32) -> (i32, i32) {
    %c0_i32 = arith.constant 0 : i32
    %c0_i32_0 = arith.constant 0 : i32
    return %arg0, %c0_i32 : i32, i32
  }
}

</mosaic_0001>

<llo_original>
// kernel: tpu_custom_call.1
$region0: #{tpu_custom_call.1}
  #allocation0 [shape = 'u32[]', space=smem, size = 0x4, offset = 0x4, fixed_abs, tag = 'smem constant byte address 0x4 - core index']
  #allocation1 [shape = 'u32[144,128]{1,0:T(1,128)}', space=vmem, size = 0x12000, scoped, tag = 'internal scratch']
  %s0 = inlined_call_operand.hbm [shape: f32[8,16], index: 0, kind: input, shape index: {}]
  %s1 = inlined_call_operand.hbm [shape: f32[8,16], index: 1, kind: input, shape index: {}]
  %s2 = inlined_call_operand.hbm [shape: f32[16,16], index: 2, kind: output, shape index: {}]
  %s3 = sld [smem:[#allocation0]]
  $region61: #{tpu_custom_call.1} parent=0
    _
  %s5 = ssub.s32 1, %s3
  %s6 = scalar_select 0, %s5, %s3
  $region1: #{tpu_custom_call.1} parent=0
    #allocation2 [shape = 'u8[8192]{0}', space=vmem, size = 0x2000, scoped, tag = 'input window, operand 0']
    #allocation3 [shape = 's32[2]{0}', space=sflag, size = 0x8, scoped, tag = 'scoped memory for tpu_custom_call.1']
    #allocation4 [shape = 's32[2]{0}', space=sflag, size = 0x8, scoped, tag = 'scoped memory for tpu_custom_call.1']
    #allocation5 [shape = 'u8[8192]{0}', space=vmem, size = 0x2000, scoped, tag = 'input window, operand 1']
    #allocation6 [shape = 's32[2]{0}', space=sflag, size = 0x8, scoped, tag = 'scoped memory for tpu_custom_call.1']
    #allocation7 [shape = 'u8[8192]{0}', space=vmem, size = 0x2000, scoped, tag = 'output window, operand 0']
    %7 = vsyncpa [#allocation3], 0
    %s8 = scalar_lea.sflag [#allocation3], 1
    %9 = vsyncpa %s8, 0
    %10 = vsyncpa [#allocation6], 0
    %s11 = scalar_lea.sflag [#allocation6], 1
    %12 = vsyncpa %s11, 0
    %13 = vsyncpa [#allocation4], 0
    %s14 = scalar_lea.sflag [#allocation4], 1
    %15 = vsyncpa %s14, 0
    loop: start=0, step=1, limit=4
    $region2: #{tpu_custom_call.1} parent=1 // loop_pre_header
      _
    $region3: #{tpu_custom_call.1} parent=1 // loop_header
      %s17 = sphi 0, %s21
      %p18 = scmp.ge.s32.totalorder %s17, 4
      %s24 = sphi 0, %s36
      %s25 = sphi 0, %s32
      %s26 = sphi 0, %s24
      %s27 = sphi 0, %s25
      %s28 = sphi 0, %s26
      %s29 = sphi 0, %s27
      %s45 = sphi 0, %s47
      %s48 = sphi 0, %s45
      %s49 = sphi 0, %s48
      %s65 = sphi 0, %s49
      %s77 = sphi 0, %s79
      %s80 = sphi 0, %s77
      %s81 = sphi 0, %s80
      %s97 = sphi 0, %s81
      %s103 = sphi 0, %s105
      %s106 = sphi 0, %s103
      %s107 = sphi 0, %s106
      %s123 = sphi 0, %s107
    $region4: #{tpu_custom_call.1} parent=1 // loop_header_branch
      %20 = sbr.rel (%p18) target = $region8
    $region5: #{tpu_custom_call.1} parent=1 // loop_body
      %s22 = ssub.s32 %s17, 1
      %s23 = ssub.s32 %s17, 2
      %s30 = sadd.s32 1, %s25
      %p31 = scmp.ge.s32.totalorder %s30, 1
      %s32 = scalar_select %p31, 0, %s30
      %s33 = sadd.s32 1, %s24
      %s34 = scalar_select %p31, %s33, %s24
      %p35 = scmp.ge.s32.totalorder %s34, 2
      %s36 = scalar_select %p35, 0, %s34
      %s37 = sadd.s32 %s24, %s25
      %p38 = scmp.lt.s32.totalorder %s37, 0
      %s39 = scalar_select %p38, %s37, 0
      %s40 = sadd.s32 %s36, %s32
      %p41 = scmp.lt.s32.totalorder %s40, 0
      %s42 = scalar_select %p41, %s40, 0
      %s43 = ssub.s32 %s39, %s42
      %p44 = scmp.eq.s32.totalorder %s43, 0
      %s46 = sadd.s32 %s45, 1
      %s47 = scalar_select %p44, %s45, %s46
      %p50 = pneg %p44
      %p51 = scmp.eq.s32.totalorder %s17, 1
      %p52 = por %p50, %p51
      %p53 = scmp.ne.s32.totalorder %s45, %s48
      %p54 = scmp.eq.s32.totalorder %s17, 0
      %p55 = por %p53, %p54
      %p56 = scmp.ne.s32.totalorder %s45, %s48
      %p57 = scmp.eq.s32.totalorder %s22, 1
      %p58 = por %p56, %p57
      %p59 = scmp.ne.s32.totalorder %s48, %s49
      %p60 = scmp.eq.s32.totalorder %s22, 0
      %p61 = por %p59, %p60
      %p62 = scmp.ne.s32.totalorder %s48, %s49
      %p63 = scmp.eq.s32.totalorder %s23, 1
      %p64 = por %p62, %p63
      %p66 = scmp.ne.s32.totalorder %s49, %s65
      %p67 = scmp.eq.s32.totalorder %s23, 0
      %p68 = por %p66, %p67
      %s69 = sadd.s32 %s24, %s25
      %p70 = scmp.lt.s32.totalorder %s69, 0
      %s71 = scalar_select %p70, %s69, 0
      %s72 = sadd.s32 %s36, %s32
      %p73 = scmp.lt.s32.totalorder %s72, 0
      %s74 = scalar_select %p73, %s72, 0
      %s75 = ssub.s32 %s71, %s74
      %p76 = scmp.eq.s32.totalorder %s75, 0
      %s78 = sadd.s32 %s77, 1
      %s79 = scalar_select %p76, %s77, %s78
      %p82 = pneg %p76
      %p83 = scmp.eq.s32.totalorder %s17, 1
      %p84 = por %p82, %p83
      %p85 = scmp.ne.s32.totalorder %s77, %s80
      %p86 = scmp.eq.s32.totalorder %s17, 0
      %p87 = por %p85, %p86
      %p88 = scmp.ne.s32.totalorder %s77, %s80
      %p89 = scmp.eq.s32.totalorder %s22, 1
      %p90 = por %p88, %p89
      %p91 = scmp.ne.s32.totalorder %s80, %s81
      %p92 = scmp.eq.s32.totalorder %s22, 0
      %p93 = por %p91, %p92
      %p94 = scmp.ne.s32.totalorder %s80, %s81
      %p95 = scmp.eq.s32.totalorder %s23, 1
      %p96 = por %p94, %p95
      %p98 = scmp.ne.s32.totalorder %s81, %s97
      %p99 = scmp.eq.s32.totalorder %s23, 0
      %p100 = por %p98, %p99
      %s101 = ssub.s32 %s24, %s36
      %p102 = scmp.eq.s32.totalorder %s101, 0
      %s104 = sadd.s32 %s103, 1
      %s105 = scalar_select %p102, %s103, %s104
      %p108 = pneg %p102
      %p109 = scmp.eq.s32.totalorder %s17, 1
      %p110 = por %p108, %p109
      %p111 = scmp.ne.s32.totalorder %s103, %s106
      %p112 = scmp.eq.s32.totalorder %s17, 0
      %p113 = por %p111, %p112
      %p114 = scmp.ne.s32.totalorder %s103, %s106
      %p115 = scmp.eq.s32.totalorder %s22, 1
      %p116 = por %p114, %p115
      %p117 = scmp.ne.s32.totalorder %s106, %s107
      %p118 = scmp.eq.s32.totalorder %s22, 0
      %p119 = por %p117, %p118
      %p120 = scmp.ne.s32.totalorder %s106, %s107
      %p121 = scmp.eq.s32.totalorder %s23, 1
      %p122 = por %p120, %p121
      %p124 = scmp.ne.s32.totalorder %s107, %s123
      %p125 = scmp.eq.s32.totalorder %s23, 0
      %p126 = por %p124, %p125
      %p127 = scmp.le.s32.totalorder 1, %s17
      %p128 = scmp.lt.s32.totalorder %s17, 3
      %p129 = pnand %p127, %p128
      %p130 = pneg %p129
      // Predicated region
      $region9: #{tpu_custom_call.1} parent=5 // pred_check
        _
      $region10: #{tpu_custom_call.1} parent=5 // pred_check_branch
        %132 = sbr.rel (%p129) target = $region12
      $region11: #{tpu_custom_call.1} parent=5 // pred_region
        %s133 = ssub.s32 %s17, 1
      $region12: #{tpu_custom_call.1} parent=5 // pred_fallthru
        _
      %p134 = scmp.lt.s32.totalorder %s17, 2
      // Predicated region
      $region13: #{tpu_custom_call.1} parent=5 // pred_check
        %p135 = pneg %p134
      $region14: #{tpu_custom_call.1} parent=5 // pred_check_branch
        %137 = sbr.rel (%p135) target = $region16
      $region15: #{tpu_custom_call.1} parent=5 // pred_region
        // Predicated region
        $region17: #{tpu_custom_call.1} parent=15 // pred_check
          %p138 = pneg %p55
        $region18: #{tpu_custom_call.1} parent=15 // pred_check_branch
          %140 = sbr.rel (%p138) target = $region20
        $region19: #{tpu_custom_call.1} parent=15 // pred_region
          %s141 = sand.u32 %s45, 1
          %s142 = scalar_lea.sflag [#allocation3], %s141
          %s143 = sand.u32 %s45, 1
          %s144 = smul.addr %s143, 8
          %s145 = scalar_lea.vmem [#allocation2], %s144
          %s146 = sadd.s32 %s24, %s25
          %p147 = scmp.lt.s32.totalorder %s146, 0
          %s148 = scalar_select %p147, %s146, 0
          %s150 = ssub.s32 128, 128
          %151 = vsyncadd %s142, %s150
          %s152 = smul.addr %s148, 128
          %s153 = scalar_lea.hbm %s0, %s152
          %s155 = sshll.u32 %s145, 4
          %s156 = int_to_ptr.vmem [resolvable:$true] %s155
          %158 = dma.hbm_to_vmem [thread:$0]  %s153, 128, %s156, %s142
        $region20: #{tpu_custom_call.1} parent=15 // pred_fallthru
          _
        // Predicated region
        $region21: #{tpu_custom_call.1} parent=15 // pred_check
          %p159 = pneg %p87
        $region22: #{tpu_custom_call.1} parent=15 // pred_check_branch
          %161 = sbr.rel (%p159) target = $region24
        $region23: #{tpu_custom_call.1} parent=15 // pred_region
          %s162 = sand.u32 %s77, 1
          %s163 = scalar_lea.sflag [#allocation6], %s162
          %s164 = sand.u32 %s77, 1
          %s165 = smul.addr %s164, 8
          %s166 = scalar_lea.vmem [#allocation5], %s165
          %s167 = sadd.s32 %s24, %s25
          %p168 = scmp.lt.s32.totalorder %s167, 0
          %s169 = scalar_select %p168, %s167, 0
          %s171 = ssub.s32 128, 128
          %172 = vsyncadd %s163, %s171
          %s173 = smul.addr %s169, 128
          %s174 = scalar_lea.hbm %s1, %s173
          %s176 = sshll.u32 %s166, 4
          %s177 = int_to_ptr.vmem [resolvable:$true] %s176
          %179 = dma.hbm_to_vmem [thread:$0]  %s174, 128, %s177, %s163
        $region24: #{tpu_custom_call.1} parent=15 // pred_fallthru
          _
      $region16: #{tpu_custom_call.1} parent=5 // pred_fallthru
        _
      %p180 = scmp.le.s32.totalorder 1, %s17
      %p181 = scmp.lt.s32.totalorder %s17, 3
      %p182 = pnand %p180, %p181
      %p183 = pneg %p182
      // Predicated region
      $region25: #{tpu_custom_call.1} parent=5 // pred_check
        _
      $region26: #{tpu_custom_call.1} parent=5 // pred_check_branch
        %185 = sbr.rel (%p182) target = $region28
      $region27: #{tpu_custom_call.1} parent=5 // pred_region
        %s186 = ssub.s32 %s17, 1
        %s187 = sand.u32 %s48, 1
        %s188 = scalar_lea.sflag [#allocation3], %s187
        %s189 = sand.u32 %s48, 1
        %s190 = smul.addr %s189, 8
        %s191 = scalar_lea.vmem [#allocation2], %s190
        // Predicated region
        $region29: #{tpu_custom_call.1} parent=27 // pred_check
          %p192 = pneg %p61
        $region30: #{tpu_custom_call.1} parent=27 // pred_check_branch
          %194 = sbr.rel (%p192) target = $region32
        $region31: #{tpu_custom_call.1} parent=27 // pred_region
          %195 = dma.done %s188, 128
        $region32: #{tpu_custom_call.1} parent=27 // pred_fallthru
          _
        %s196 = sand.u32 %s80, 1
        %s197 = scalar_lea.sflag [#allocation6], %s196
        %s198 = sand.u32 %s80, 1
        %s199 = smul.addr %s198, 8
        %s200 = scalar_lea.vmem [#allocation5], %s199
        // Predicated region
        $region33: #{tpu_custom_call.1} parent=27 // pred_check
          %p201 = pneg %p93
        $region34: #{tpu_custom_call.1} parent=27 // pred_check_branch
          %203 = sbr.rel (%p201) target = $region36
        $region35: #{tpu_custom_call.1} parent=27 // pred_region
          %204 = dma.done %s197, 128
        $region36: #{tpu_custom_call.1} parent=27 // pred_fallthru
          _
        %s205 = sand.u32 %s48, 1
        %s206 = scalar_lea.sflag [#allocation3], %s205
        %s207 = sand.u32 %s48, 1
        %s208 = smul.addr %s207, 8
        %s209 = scalar_lea.vmem [#allocation2], %s208
        %p210 = pneg %p61
        %p211 = pneg %p58
        %s212 = sand.u32 %s80, 1
        %s213 = scalar_lea.sflag [#allocation6], %s212
        %s214 = sand.u32 %s80, 1
        %s215 = smul.addr %s214, 8
        %s216 = scalar_lea.vmem [#allocation5], %s215
        %p217 = pneg %p93
        %p218 = pneg %p90
        %p219 = pneg %p119
        %p220 = pneg %p116
        %s221 = sand.u32 %s106, 1
        %s222 = scalar_lea.sflag [#allocation4], %s221
        %s223 = sand.u32 %s106, 1
        %s224 = smul.addr %s223, 8
        %s225 = scalar_lea.vmem [#allocation7], %s224
        %s226 = sadd.s32 %s26, %s27
        %p227 = scmp.lt.s32.totalorder %s226, 0
        %s228 = scalar_select %p227, %s226, 0
        %s229 = sadd.s32 %s26, %s27
        %p230 = scmp.lt.s32.totalorder %s229, 0
        %s231 = scalar_select %p230, %s229, 0
        %p232 = scmp.eq.s32.totalorder %s27, 0
        // Predicated region
        $region37: #{tpu_custom_call.1} parent=27 // pred_check
          %p233 = pneg %p232
        $region38: #{tpu_custom_call.1} parent=27 // pred_check_branch
          %235 = sbr.rel (%p233) target = $region40
        $region39: #{tpu_custom_call.1} parent=27 // pred_region
          %vm236 = vcmask 130048
          %237 = vst.msk [vmem:[%s225] sm:$0xff] %vm236, 0.0
        $region40: #{tpu_custom_call.1} parent=27 // pred_fallthru
          _
        %v238 = vld [vmem:[%s191] sm:$0xff]
        %v239 = vld [vmem:[%s200] sm:$0xff]
        %v240 = vsub.f32 %v238, %v239
        %v241 = vmul.f32 %v240, %v240
        %v242 = vmax.f32 %v238, 0.0
        %v243 = vadd.f32 %v241, %v242
        %v244 = vmul.f32 %v238, %v239
        %v245 = vsub.f32 %v243, %v244
        %v246 = vand.u32 2147483647, %v238
        %v247 = vsub.f32 0.0, %v246
        %v248 = vmul.f32 %v247, 1.442695
        %v249 = vpow.pop %v248
        %v250 = vadd.f32 %v249, 1.0
        %v251 = vlog2.pop %v250
        %v252 = vmul.f32 %v251, 0.6931472
        %v253 = vmul.f32 -0.5, %v249
        %v254 = vadd.f32 %v253, 1.0
        %v255 = vmul.f32 %v254, %v249
        %v256 = vand.u32 2147483647, %v249
        %vm257 = vcmp.lt.f32.partialorder %v256, 0.0004427343
        %v258 = vsel %vm257, %v255, %v252
        %v259 = vadd.f32 %v245, %v258
        %s260 = sadd.s32 %s26, %s27
        %s261 = smul.u32 %s260, 8
        %s262 = ssub.s32 8, %s261
        %p263 = scmp.ge.s32.totalorder %s262, 8
        // Predicated region
        $region41: #{tpu_custom_call.1} parent=27 // pred_check
          %p264 = pneg %p263
        $region42: #{tpu_custom_call.1} parent=27 // pred_check_branch
          %266 = sbr.rel (%p264) target = $region44
        $region43: #{tpu_custom_call.1} parent=27 // pred_region
          %v267 = vld [vmem:[%s225] sm:$0xff]
          %v268 = vadd.f32 %v259, 0.0
          %v269 = vadd.f32 %v267, %v268
          %vm270 = vcmask 130048
          %271 = vst.msk [vmem:[%s225] sm:$0xff] %vm270, %v269
        $region44: #{tpu_custom_call.1} parent=27 // pred_fallthru
          _
        %p272 = scmp.lt.s32.totalorder %s262, 8
        // Predicated region
        $region45: #{tpu_custom_call.1} parent=27 // pred_check
          %p273 = pneg %p272
        $region46: #{tpu_custom_call.1} parent=27 // pred_check_branch
          %275 = sbr.rel (%p273) target = $region48
        $region47: #{tpu_custom_call.1} parent=27 // pred_region
          %v276 = vlaneseq
          %v277 = vshrl.u32 %v276, 7
          %v278 = vstv %s262
          %vm279 = vcmp.lt.s32.totalorder %v277, %v278
          %v280 = vsel %vm279, %v259, 0.0
          %v281 = vld [vmem:[%s225] sm:$0xff]
          %v282 = vadd.f32 %v280, 0.0
          %v283 = vadd.f32 %v281, %v282
          %vm284 = vcmask 130048
          %285 = vst.msk [vmem:[%s225] sm:$0xff] %vm284, %v283
        $region48: #{tpu_custom_call.1} parent=27 // pred_fallthru
          _
        %s286 = sand.u32 %s106, 1
        %s287 = scalar_lea.sflag [#allocation4], %s286
        %s288 = sand.u32 %s106, 1
        %s289 = smul.addr %s288, 8
        %s290 = scalar_lea.vmem [#allocation7], %s289
        // Predicated region
        $region49: #{tpu_custom_call.1} parent=27 // pred_check
          %p291 = pneg %p116
        $region50: #{tpu_custom_call.1} parent=27 // pred_check_branch
          %293 = sbr.rel (%p291) target = $region52
        $region51: #{tpu_custom_call.1} parent=27 // pred_region
          %s295 = ssub.s32 128, 128
          %296 = vsyncadd %s287, %s295
          %s297 = smul.addr %s26, 128
          %s298 = scalar_lea.hbm %s2, %s297
          %s300 = sshll.u32 %s290, 4
          %s301 = int_to_ptr.vmem [resolvable:$true] %s300
          %303 = dma.vmem_to_hbm [thread:$0]  %s301, 128, %s298, %s287
        $region52: #{tpu_custom_call.1} parent=27 // pred_fallthru
          _
      $region28: #{tpu_custom_call.1} parent=5 // pred_fallthru
        _
      %p304 = scmp.le.s32.totalorder 2, %s17
      // Predicated region
      $region53: #{tpu_custom_call.1} parent=5 // pred_check
        %p305 = pneg %p304
      $region54: #{tpu_custom_call.1} parent=5 // pred_check_branch
        %307 = sbr.rel (%p305) target = $region56
      $region55: #{tpu_custom_call.1} parent=5 // pred_region
        %s308 = ssub.s32 %s17, 2
        // Predicated region
        $region57: #{tpu_custom_call.1} parent=55 // pred_check
          %p309 = pneg %p122
        $region58: #{tpu_custom_call.1} parent=55 // pred_check_branch
          %311 = sbr.rel (%p309) target = $region60
        $region59: #{tpu_custom_call.1} parent=55 // pred_region
          %s312 = sand.u32 %s107, 1
          %s313 = scalar_lea.sflag [#allocation4], %s312
          %s314 = sand.u32 %s107, 1
          %s315 = smul.addr %s314, 8
          %s316 = scalar_lea.vmem [#allocation7], %s315
          %317 = dma.done %s313, 128
        $region60: #{tpu_custom_call.1} parent=55 // pred_fallthru
          _
      $region56: #{tpu_custom_call.1} parent=5 // pred_fallthru
        _
    $region6: #{tpu_custom_call.1} parent=1 // loop_footer
      %s21 = sadd.s32 1, %s17
    $region7: #{tpu_custom_call.1} parent=1 // loop_footer_branch
      %16 = sbr.rel target = $region3
    $region8: #{tpu_custom_call.1} parent=1 // loop_exit
      _
    %318 = vsyncpa [#allocation3], 1
    %s319 = scalar_lea.sflag [#allocation3], 1
    %320 = vsyncpa %s319, 1
    %321 = vsyncpa [#allocation6], 1
    %s322 = scalar_lea.sflag [#allocation6], 1
    %323 = vsyncpa %s322, 1
    %324 = vsyncpa [#allocation4], 1
    %s325 = scalar_lea.sflag [#allocation4], 1
    %326 = vsyncpa %s325, 1

</llo_original>
